<compile_context>
chip_gen: v6e
topology: v6e:2x2x1
jax: 0.10.0
libtpu: 0.0.40
codegen_flags: <defaults>
</compile_context>

<pallas_src>
import functools

import jax
import jax.numpy as jnp
from jax.experimental import pallas as pl
from jax.experimental.pallas import tpu as pltpu

LEAKY_SLOPE = 0.01   # F.leaky_relu default negative_slope
NEG_BIG = -1e30      # bias value for padded tag columns -> exp() == 0 (f32)
LANE = 128
SUBLANE = 8


def _round_up(x, m):
    return ((x + m - 1) // m) * m


def _cdiv(a, b):
    return (a + b - 1) // b


def _fine_ner_head_kernel(x_ref, w_ref, b_ref, out_ref):
    """One (TM, H) row tile per grid step.

    x_ref  : (TM, H)      flattened encoder hidden states (native dtype, f32/bf16)
    w_ref  : (H, T_pad)   feedforward weight, transposed + lane-padded (pad cols = 0)
    b_ref  : (1, T_pad)   feedforward bias (f32), pad cols = -1e30
    out_ref: (TM, T)      log-softmax token scores (only the T real tag columns)
    """
    x = x_ref[...]                                        # (TM, H), native dtype
    # F.leaky_relu (elementwise, VPU)
    h = jnp.where(x > 0, x, LEAKY_SLOPE * x)
    # nn.Dropout(0.1): identity in eval/predict mode.
    # TODO(synk): train-mode stochastic dropout (pltpu.prng_seed/prng_random_bits) omitted.

    # nn.Linear: h @ W^T + b  (MXU matmul in the input dtype, f32 accumulation)
    scores = jnp.dot(h, w_ref[...], preferred_element_type=jnp.float32)
    scores = scores + b_ref[...]                          # (TM, T_pad) + (1, T_pad), f32

    # F.log_softmax over the tag (last) axis — numerically stable, all in f32;
    # padded columns carry -1e30 so they contribute exp()==0 to the denominator.
    m = jnp.max(scores, axis=-1, keepdims=True)
    s = scores - m
    lse = jnp.log(jnp.sum(jnp.exp(s), axis=-1, keepdims=True))
    logp = s - lse                                        # (TM, T_pad), f32

    n_tags = out_ref.shape[-1]
    out_ref[...] = logp[:, :n_tags].astype(out_ref.dtype)  # store only real tag columns


def prepare_fine_ner_head_params(w, b, compute_dtype=jnp.float32):
    """One-time prep of nn.Linear params (hoisted out of the per-call path).

    w: [T, H] (nn.Linear layout), b: [T]
    -> (w_t [H, T_pad] in compute_dtype with zero pad cols,
        b_p [1, T_pad] f32 with -1e30 pad cols)
    """
    T, H = w.shape
    T_pad = _round_up(T, LANE)
    w_t = jnp.zeros((H, T_pad), compute_dtype).at[:, :T].set(w.T.astype(compute_dtype))
    b_p = jnp.full((1, T_pad), NEG_BIG, jnp.float32).at[0, :T].set(b.astype(jnp.float32))
    return w_t, b_p


def _vmem_budget_bytes():
    """Generation-aware VMEM budget (~60% of physical per-core VMEM)."""
    try:
        cap = int(pltpu.get_tpu_info().vmem_capacity_bytes)
    except Exception:
        cap = 64 << 20          # conservative fallback (v7x-sized)
    if not cap or cap <= 0:
        cap = 64 << 20
    return int(cap * 0.6)


def _fine_ner_head_impl(x2d, w_t, b_p, n_tags, tm):
    rows, H = x2d.shape
    T_pad = w_t.shape[1]

    # At least 2 grid steps whenever rows > SUBLANE so both v7x TensorCores get
    # work ("parallel" grid axis is sharded across cores).
    tm_eff = min(tm, _round_up(max(_cdiv(rows, 2), 1), SUBLANE))
    tm_eff = max(tm_eff, SUBLANE)

    # VMEM sizing: double-buffered x tile + out tile + resident weight/bias + slack.
    budget = _vmem_budget_bytes()

    def need(t):
        return (2 * t * H * x2d.dtype.itemsize
                + 2 * t * n_tags * 4
                + 2 * (H * T_pad) * w_t.dtype.itemsize
                + 2 * T_pad * 4
                + (4 << 20))

    while need(tm_eff) > budget and tm_eff > 256:
        tm_eff = _round_up(tm_eff // 2, SUBLANE)

    vmem_bytes = int(min(max(need(tm_eff), 16 << 20), budget))

    grid = (_cdiv(rows, tm_eff),)          # ragged last block handled by Pallas
    return pl.pallas_call(
        _fine_ner_head_kernel,
        out_shape=jax.ShapeDtypeStruct((rows, n_tags), jnp.float32),
        grid_spec=pltpu.PrefetchScalarGridSpec(
            num_scalar_prefetch=0,
            grid=grid,
            in_specs=[
                pl.BlockSpec((tm_eff, H), lambda i: (i, 0)),
                pl.BlockSpec((H, T_pad), lambda i: (0, 0)),   # constant -> stays resident
                pl.BlockSpec((1, T_pad), lambda i: (0, 0)),   # constant -> stays resident
            ],
            out_specs=pl.BlockSpec((tm_eff, n_tags), lambda i: (i, 0)),
        ),
        compiler_params=pltpu.CompilerParams(
            dimension_semantics=("parallel",),
            vmem_limit_bytes=vmem_bytes,
        ),
    )(x2d, w_t, b_p)


@functools.partial(jax.jit, static_argnames=("n_tags", "tm"))
def fine_ner_head_padded(hidden, w_t, b_p, *, n_tags, tm=2048):
    """hidden: [B, S, H] (f32 or bf16, encoder-native), pre-padded params.

    Returns [B, S, n_tags] f32 log-probs. No host-side pad/cast of the
    activations: only a free reshape before the kernel.
    """
    B, S, H = hidden.shape
    x2d = hidden.reshape(B * S, H)                     # free, no copy / no cast
    out = _fine_ner_head_impl(x2d, w_t, b_p, n_tags, tm)
    return out.reshape(B, S, n_tags)


def fine_ner_head(hidden, w, b, *, tm=2048):
    """Convenience wrapper taking nn.Linear-layout params (pads them per call)."""
    w_t, b_p = prepare_fine_ner_head_params(w, b, compute_dtype=hidden.dtype)
    return fine_ner_head_padded(hidden, w_t, b_p, n_tags=w.shape[0], tm=tm)


def setup_fine_tags(tag_to_id):
    """Mirror FineNerModel.setup_fine_crf: drop trigger tag types."""
    triggers = ["PARAM", "OBJ_DIR", "LIMIT"]
    fine_tag_to_id = {}
    for k, _v in tag_to_id.items():
        if k[2:] not in triggers:
            fine_tag_to_id[k] = len(fine_tag_to_id)
    return fine_tag_to_id


def reference_head(hidden, w, b):
    h32 = hidden.astype(jnp.float32)
    h = jnp.where(h32 > 0, h32, LEAKY_SLOPE * h32)
    scores = jnp.einsum("bsh,th->bst", h, w.astype(jnp.float32)) + b.astype(jnp.float32)
    return jax.nn.log_softmax(scores, axis=-1)


if __name__ == "__main__":
    # Example tag vocabulary (BIO over 5 entity types; 3 are trigger types).
    tag_to_id = {
        "O": 0,
        "B-VAR": 1, "I-VAR": 2,
        "B-PARAM": 3, "I-PARAM": 4,
        "B-LIMIT": 5, "I-LIMIT": 6,
        "B-OBJ_DIR": 7, "I-OBJ_DIR": 8,
        "B-CONST_DIR": 9, "I-CONST_DIR": 10,
    }
    fine_tag_to_id = setup_fine_tags(tag_to_id)
    T = len(fine_tag_to_id)                      # 5: O, B/I-VAR, B/I-CONST_DIR

    # Small, forward-consistent shapes.
    B, S, H = 2, 8, 32                           # batch, seq (with triggers), hidden

    key = jax.random.PRNGKey(0)
    k_h, k_w, k_b = jax.random.split(key, 3)

    # Stand-in for encoder(...).last_hidden_state (frozen encoder not translated).
    hidden = jax.random.normal(k_h, (B, S, H), dtype=jnp.float32)

    # Deterministic init of self.feedforward (nn.Linear(H, T)),
    # PyTorch-style uniform(-1/sqrt(H), 1/sqrt(H)); kept in nn.Linear [T, H] layout.
    bound = 1.0 / jnp.sqrt(jnp.float32(H))
    w = jax.random.uniform(k_w, (T, H), jnp.float32, -bound, bound)
    b = jax.random.uniform(k_b, (T,), jnp.float32, -bound, bound)

    # TODO(synk): the XLM-RoBERTa encoder, trigger insertion (convert_adjust_batch),
    # CRF log-likelihood / Viterbi decode, extract_spans / post_process / SpanF1
    # are sequential Python / dict logic with no clean Pallas equivalent.

    # One-time parameter prep (hoisted out of the per-call latency path).
    w_t, b_p = prepare_fine_ner_head_params(w, b, compute_dtype=jnp.float32)

    # --- f32 path (matches PyTorch forward math) ---
    out = fine_ner_head_padded(hidden, w_t, b_p, n_tags=T)
    out = jax.block_until_ready(out)
    ref = reference_head(hidden, w, b)
    assert out.shape == (B, S, T)
    assert jnp.allclose(out, ref, atol=1e-5, rtol=1e-5), "mismatch vs JAX reference (f32)"
    assert jnp.allclose(jnp.sum(jnp.exp(out), axis=-1), 1.0, atol=1e-4)

    # --- bf16 activation stream + ragged row count (exercises partial last tile) ---
    B2, S2 = 3, 7                                # 21 rows -> ragged last block
    hidden_bf16 = jax.random.normal(
        jax.random.PRNGKey(1), (B2, S2, H), jnp.float32).astype(jnp.bfloat16)
    w_t_bf, b_p_bf = prepare_fine_ner_head_params(w, b, compute_dtype=jnp.bfloat16)
    out2 = jax.block_until_ready(
        fine_ner_head_padded(hidden_bf16, w_t_bf, b_p_bf, n_tags=T))
    ref2 = reference_head(hidden_bf16, w, b)
    assert out2.shape == (B2, S2, T)
    assert jnp.allclose(jnp.sum(jnp.exp(out2), axis=-1), 1.0, atol=1e-4)
    assert jnp.allclose(out2, ref2, atol=5e-2, rtol=5e-2), "mismatch vs JAX reference (bf16)"

    print("KERNEL_OK")
</pallas_src>

<mosaic_0001>
module attributes {stable_mosaic.version = 11 : i64} {
  func.func @_fine_ner_head_kernel(%arg0: i32, %arg1: memref<8x32xf32, #tpu.memory_space<vmem>>, %arg2: memref<32x128xf32, #tpu.memory_space<vmem>>, %arg3: memref<1x128xf32, #tpu.memory_space<vmem>>, %arg4: memref<8x5xf32, #tpu.memory_space<vmem>>) attributes {dimension_semantics = [#tpu.dimension_semantics<parallel>], iteration_bounds = array<i64: 2>, scalar_prefetch = 0 : i64, scratch_operands = 0 : i64, tpu.core_type = #tpu.core_type<tc>, window_params = [{transform_indices = @transform_0, window_bounds = array<i64: 8, 32>}, {pipeline_mode = #tpu.pipeline_mode<synchronous>, transform_indices = @transform_1, window_bounds = array<i64: 32, 128>}, {pipeline_mode = #tpu.pipeline_mode<synchronous>, transform_indices = @transform_2, window_bounds = array<i64: 1, 128>}, {transform_indices = @transform_3, window_bounds = array<i64: 8, 5>}]} {
    %c0 = arith.constant 0 : index
    %c0_0 = arith.constant 0 : index
    %0 = vector.load %arg1[%c0, %c0_0] : memref<8x32xf32, #tpu.memory_space<vmem>>, vector<8x32xf32>
    %cst = arith.constant 0.000000e+00 : f32
    %1 = vector.broadcast %cst : f32 to vector<8x32xf32>
    %2 = arith.cmpf ogt, %0, %1 : vector<8x32xf32>
    %cst_1 = arith.constant 0.00999999977 : f32
    %3 = vector.broadcast %cst_1 : f32 to vector<8x32xf32>
    %4 = arith.mulf %3, %0 : vector<8x32xf32>
    %5 = arith.select %2, %0, %4 : vector<8x32xi1>, vector<8x32xf32>
    %c0_2 = arith.constant 0 : index
    %c0_3 = arith.constant 0 : index
    %6 = vector.load %arg2[%c0_2, %c0_3] : memref<32x128xf32, #tpu.memory_space<vmem>>, vector<32x128xf32>
    %cst_4 = arith.constant dense<0.000000e+00> : vector<8x128xf32>
    %7 = tpu.matmul %5, %6, %cst_4 {dimension_numbers = #tpu.dot_dimension_numbers<[1], [0], [0], [1], [0, 0, 1, 1], [], []>} : vector<8x32xf32>, vector<32x128xf32>, vector<8x128xf32> -> vector<8x128xf32>
    %c0_5 = arith.constant 0 : index
    %c0_6 = arith.constant 0 : index
    %8 = vector.load %arg3[%c0_5, %c0_6] : memref<1x128xf32, #tpu.memory_space<vmem>>, vector<1x128xf32>
    %9 = vector.broadcast %8 : vector<1x128xf32> to vector<8x128xf32>
    %10 = arith.addf %7, %9 : vector<8x128xf32>
    %cst_7 = arith.constant dense<0xFF800000> : vector<8xf32>
    %11 = vector.multi_reduction <maximumf>, %10, %cst_7 [1] : vector<8x128xf32> to vector<8xf32>
    %12 = vector.shape_cast %11 : vector<8xf32> to vector<8x1xf32>
    %13 = vector.broadcast %12 : vector<8x1xf32> to vector<8x128xf32>
    %14 = arith.subf %10, %13 : vector<8x128xf32>
    %15 = math.exp %14 : vector<8x128xf32>
    %cst_8 = arith.constant dense<0.000000e+00> : vector<8xf32>
    %16 = vector.multi_reduction <add>, %15, %cst_8 [1] : vector<8x128xf32> to vector<8xf32>
    %17 = vector.shape_cast %16 : vector<8xf32> to vector<8x1xf32>
    %18 = math.log %17 : vector<8x1xf32>
    %19 = vector.broadcast %18 : vector<8x1xf32> to vector<8x128xf32>
    %20 = arith.subf %14, %19 : vector<8x128xf32>
    %21 = vector.extract_strided_slice %20 {offsets = [0, 0], sizes = [8, 5], strides = [1, 1]} : vector<8x128xf32> to vector<8x5xf32>
    %c0_9 = arith.constant 0 : index
    %c0_10 = arith.constant 0 : index
    %22 = vector.load %arg4[%c0_9, %c0_10] : memref<8x5xf32, #tpu.memory_space<vmem>>, vector<8x5xf32>
    tpu.vector_store %arg4[%c0_9, %c0_10], %21 {strides = array<i32>} : memref<8x5xf32, #tpu.memory_space<vmem>>, vector<8x5xf32>,
    return
  }
  func.func @transform_0(%arg0: i32) -> (i32, i32) {
    %c0_i32 = arith.constant 0 : i32
    %c0_i32_0 = arith.constant 0 : i32
    return %arg0, %c0_i32 : i32, i32
  }
  func.func @transform_1(%arg0: i32) -> (i32, i32) {
    %c0_i32 = arith.constant 0 : i32
    %c0_i32_0 = arith.constant 0 : i32
    %c0_i32_1 = arith.constant 0 : i32
    return %c0_i32, %c0_i32_0 : i32, i32
  }
  func.func @transform_2(%arg0: i32) -> (i32, i32) {
    %c0_i32 = arith.constant 0 : i32
    %c0_i32_0 = arith.constant 0 : i32
    %c0_i32_1 = arith.constant 0 : i32
    return %c0_i32, %c0_i32_0 : i32, i32
  }
  func.func @transform_3(%arg0: i32) -> (i32, i32) {
    %c0_i32 = arith.constant 0 : i32
    %c0_i32_0 = arith.constant 0 : i32
    return %arg0, %c0_i32 : i32, i32
  }
}

</mosaic_0001>

<llo_original>
// kernel: fine_ner_head_padded.1
$region0: #{fine_ner_head_padded.1}
  #allocation0 [shape = 'u32[]', space=smem, size = 0x4, offset = 0x4, fixed_abs, tag = 'smem constant byte address 0x4 - core index']
  #allocation1 [shape = 'u32[144,128]{1,0:T(1,128)}', space=vmem, size = 0x12000, scoped, tag = 'internal scratch']
  %s0 = inlined_call_operand.hbm [shape: f32[16,32], index: 0, kind: input, shape index: {}]
  %s1 = inlined_call_operand.hbm [shape: f32[32,128], index: 1, kind: input, shape index: {}]
  %s2 = inlined_call_operand.vmem [shape: f32[1,128], index: 2, kind: input, shape index: {}]
  %s3 = inlined_call_operand.vmem [shape: f32[16,5], index: 3, kind: output, shape index: {}]
  %s4 = sld [smem:[#allocation0]]
  $region53: #{fine_ner_head_padded.1} parent=0
    _
  %s6 = ssub.s32 1, %s4
  %s7 = scalar_select 0, %s6, %s4
  $region1: #{fine_ner_head_padded.1} parent=0
    #allocation2 [shape = 'u8[8192]{0}', space=vmem, size = 0x2000, scoped, tag = 'input window, operand 0']
    #allocation3 [shape = 's32[2]{0}', space=sflag, size = 0x8, scoped, tag = 'scoped memory for fine_ner_head_padded.1']
    #allocation4 [shape = 'u8[16384]{0}', space=vmem, size = 0x4000, scoped, tag = 'input window, operand 1, single buffered']
    #allocation5 [shape = 's32[1]{0}', space=sflag, size = 0x4, scoped, tag = 'scoped memory for fine_ner_head_padded.1']
    %8 = vsyncpa [#allocation3], 0
    %s9 = scalar_lea.sflag [#allocation3], 1
    %10 = vsyncpa %s9, 0
    %11 = vsyncpa [#allocation5], 0
    loop: start=0, step=1, limit=4
    $region2: #{fine_ner_head_padded.1} parent=1 // loop_pre_header
      _
    $region3: #{fine_ner_head_padded.1} parent=1 // loop_header
      %s13 = sphi 0, %s17
      %p14 = scmp.ge.s32.totalorder %s13, 4
      %s23 = sphi 0, %s25
      %s26 = sphi 0, %s23
      %s27 = sphi 0, %s26
      %s43 = sphi 0, %s27
      %s47 = sphi 0, %s47
      %s49 = sphi 0, %s47
      %s50 = sphi 0, %s49
      %s64 = sphi 0, %s50
      %s68 = sphi 0, %s68
      %s70 = sphi 0, %s68
      %s71 = sphi 0, %s70
      %s85 = sphi 0, %s71
      %s91 = sphi 0, %s93
      %s94 = sphi 0, %s91
      %s95 = sphi 0, %s94
      %s111 = sphi 0, %s95
    $region4: #{fine_ner_head_padded.1} parent=1 // loop_header_branch
      %16 = sbr.rel (%p14) target = $region8
    $region5: #{fine_ner_head_padded.1} parent=1 // loop_body
      %s18 = ssub.s32 %s13, 1
      %s19 = ssub.s32 %s13, 2
      %s20 = sadd.s32 %s13, 1
      %s21 = ssub.s32 %s13, %s20
      %p22 = scmp.eq.s32.totalorder %s21, 0
      %s24 = sadd.s32 %s23, 1
      %s25 = scalar_select %p22, %s23, %s24
      %p28 = pneg %p22
      %p29 = scmp.eq.s32.totalorder %s13, 1
      %p30 = por %p28, %p29
      %p31 = scmp.ne.s32.totalorder %s23, %s26
      %p32 = scmp.eq.s32.totalorder %s13, 0
      %p33 = por %p31, %p32
      %p34 = scmp.ne.s32.totalorder %s23, %s26
      %p35 = scmp.eq.s32.totalorder %s18, 1
      %p36 = por %p34, %p35
      %p37 = scmp.ne.s32.totalorder %s26, %s27
      %p38 = scmp.eq.s32.totalorder %s18, 0
      %p39 = por %p37, %p38
      %p40 = scmp.ne.s32.totalorder %s26, %s27
      %p41 = scmp.eq.s32.totalorder %s19, 1
      %p42 = por %p40, %p41
      %p44 = scmp.ne.s32.totalorder %s27, %s43
      %p45 = scmp.eq.s32.totalorder %s19, 0
      %p46 = por %p44, %p45
      %s48 = sadd.s32 %s47, 1
      %p51 = scmp.eq.s32.totalorder %s13, 1
      %p52 = scmp.ne.s32.totalorder %s47, %s49
      %p53 = scmp.eq.s32.totalorder %s13, 0
      %p54 = por %p52, %p53
      %p55 = scmp.ne.s32.totalorder %s47, %s49
      %p56 = scmp.eq.s32.totalorder %s18, 1
      %p57 = por %p55, %p56
      %p58 = scmp.ne.s32.totalorder %s49, %s50
      %p59 = scmp.eq.s32.totalorder %s18, 0
      %p60 = por %p58, %p59
      %p61 = scmp.ne.s32.totalorder %s49, %s50
      %p62 = scmp.eq.s32.totalorder %s19, 1
      %p63 = por %p61, %p62
      %p65 = scmp.ne.s32.totalorder %s50, %s64
      %p66 = scmp.eq.s32.totalorder %s19, 0
      %p67 = por %p65, %p66
      %s69 = sadd.s32 %s68, 1
      %p72 = scmp.eq.s32.totalorder %s13, 1
      %p73 = scmp.ne.s32.totalorder %s68, %s70
      %p74 = scmp.eq.s32.totalorder %s13, 0
      %p75 = por %p73, %p74
      %p76 = scmp.ne.s32.totalorder %s68, %s70
      %p77 = scmp.eq.s32.totalorder %s18, 1
      %p78 = por %p76, %p77
      %p79 = scmp.ne.s32.totalorder %s70, %s71
      %p80 = scmp.eq.s32.totalorder %s18, 0
      %p81 = por %p79, %p80
      %p82 = scmp.ne.s32.totalorder %s70, %s71
      %p83 = scmp.eq.s32.totalorder %s19, 1
      %p84 = por %p82, %p83
      %p86 = scmp.ne.s32.totalorder %s71, %s85
      %p87 = scmp.eq.s32.totalorder %s19, 0
      %p88 = por %p86, %p87
      %s89 = ssub.s32 %s13, %s20
      %p90 = scmp.eq.s32.totalorder %s89, 0
      %s92 = sadd.s32 %s91, 1
      %s93 = scalar_select %p90, %s91, %s92
      %p96 = pneg %p90
      %p97 = scmp.eq.s32.totalorder %s13, 1
      %p98 = por %p96, %p97
      %p99 = scmp.ne.s32.totalorder %s91, %s94
      %p100 = scmp.eq.s32.totalorder %s13, 0
      %p101 = por %p99, %p100
      %p102 = scmp.ne.s32.totalorder %s91, %s94
      %p103 = scmp.eq.s32.totalorder %s18, 1
      %p104 = por %p102, %p103
      %p105 = scmp.ne.s32.totalorder %s94, %s95
      %p106 = scmp.eq.s32.totalorder %s18, 0
      %p107 = por %p105, %p106
      %p108 = scmp.ne.s32.totalorder %s94, %s95
      %p109 = scmp.eq.s32.totalorder %s19, 1
      %p110 = por %p108, %p109
      %p112 = scmp.ne.s32.totalorder %s95, %s111
      %p113 = scmp.eq.s32.totalorder %s19, 0
      %p114 = por %p112, %p113
      %p115 = scmp.le.s32.totalorder 1, %s13
      %p116 = scmp.lt.s32.totalorder %s13, 3
      %p117 = pnand %p115, %p116
      %p118 = pneg %p117
      // Predicated region
      $region9: #{fine_ner_head_padded.1} parent=5 // pred_check
        _
      $region10: #{fine_ner_head_padded.1} parent=5 // pred_check_branch
        %120 = sbr.rel (%p117) target = $region12
      $region11: #{fine_ner_head_padded.1} parent=5 // pred_region
        %s121 = ssub.s32 %s13, 1
        // Predicated region
        $region13: #{fine_ner_head_padded.1} parent=11 // pred_check
          %p122 = pneg %p60
        $region14: #{fine_ner_head_padded.1} parent=11 // pred_check_branch
          %124 = sbr.rel (%p122) target = $region16
        $region15: #{fine_ner_head_padded.1} parent=11 // pred_region
          %s126 = ssub.s32 512, 512
          %127 = vsyncadd [#allocation5], %s126
          %s128 = sshll.u32 [#allocation4], 4
          %s129 = int_to_ptr.vmem [resolvable:$true] %s128
          %134 = dma.hbm_to_vmem [thread:$0]  %s1, 512, %s129, [#allocation5], 128, 128, 8
        $region16: #{fine_ner_head_padded.1} parent=11 // pred_fallthru
          _
        // Predicated region
        $region17: #{fine_ner_head_padded.1} parent=11 // pred_check
          %p135 = pneg %p81
        $region18: #{fine_ner_head_padded.1} parent=11 // pred_check_branch
          %137 = sbr.rel (%p135) target = $region20
        $region19: #{fine_ner_head_padded.1} parent=11 // pred_region
          _
        $region20: #{fine_ner_head_padded.1} parent=11 // pred_fallthru
          _
      $region12: #{fine_ner_head_padded.1} parent=5 // pred_fallthru
        _
      %p138 = scmp.lt.s32.totalorder %s13, 2
      // Predicated region
      $region21: #{fine_ner_head_padded.1} parent=5 // pred_check
        %p139 = pneg %p138
      $region22: #{fine_ner_head_padded.1} parent=5 // pred_check_branch
        %141 = sbr.rel (%p139) target = $region24
      $region23: #{fine_ner_head_padded.1} parent=5 // pred_region
        // Predicated region
        $region25: #{fine_ner_head_padded.1} parent=23 // pred_check
          %p142 = pneg %p33
        $region26: #{fine_ner_head_padded.1} parent=23 // pred_check_branch
          %144 = sbr.rel (%p142) target = $region28
        $region27: #{fine_ner_head_padded.1} parent=23 // pred_region
          %s145 = sand.u32 %s23, 1
          %s146 = scalar_lea.sflag [#allocation3], %s145
          %s147 = sand.u32 %s23, 1
          %s148 = smul.addr %s147, 8
          %s149 = scalar_lea.vmem [#allocation2], %s148
          %s151 = ssub.s32 128, 128
          %152 = vsyncadd %s146, %s151
          %s153 = smul.addr %s13, 128
          %s154 = scalar_lea.hbm %s0, %s153
          %s156 = sshll.u32 %s149, 4
          %s157 = int_to_ptr.vmem [resolvable:$true] %s156
          %159 = dma.hbm_to_vmem [thread:$0]  %s154, 128, %s157, %s146
        $region28: #{fine_ner_head_padded.1} parent=23 // pred_fallthru
          _
      $region24: #{fine_ner_head_padded.1} parent=5 // pred_fallthru
        _
      %p160 = scmp.le.s32.totalorder 1, %s13
      %p161 = scmp.lt.s32.totalorder %s13, 3
      %p162 = pnand %p160, %p161
      %p163 = pneg %p162
      // Predicated region
      $region29: #{fine_ner_head_padded.1} parent=5 // pred_check
        _
      $region30: #{fine_ner_head_padded.1} parent=5 // pred_check_branch
        %165 = sbr.rel (%p162) target = $region32
      $region31: #{fine_ner_head_padded.1} parent=5 // pred_region
        %s166 = ssub.s32 %s13, 1
        %s167 = sand.u32 %s26, 1
        %s168 = scalar_lea.sflag [#allocation3], %s167
        %s169 = sand.u32 %s26, 1
        %s170 = smul.addr %s169, 8
        %s171 = scalar_lea.vmem [#allocation2], %s170
        // Predicated region
        $region33: #{fine_ner_head_padded.1} parent=31 // pred_check
          %p172 = pneg %p39
        $region34: #{fine_ner_head_padded.1} parent=31 // pred_check_branch
          %174 = sbr.rel (%p172) target = $region36
        $region35: #{fine_ner_head_padded.1} parent=31 // pred_region
          %175 = dma.done %s168, 128
        $region36: #{fine_ner_head_padded.1} parent=31 // pred_fallthru
          _
        // Predicated region
        $region37: #{fine_ner_head_padded.1} parent=31 // pred_check
          %p176 = pneg %p60
        $region38: #{fine_ner_head_padded.1} parent=31 // pred_check_branch
          %178 = sbr.rel (%p176) target = $region40
        $region39: #{fine_ner_head_padded.1} parent=31 // pred_region
          %179 = dma.done [#allocation5], 512
        $region40: #{fine_ner_head_padded.1} parent=31 // pred_fallthru
          _
        %s180 = sand.u32 %s26, 1
        %s181 = scalar_lea.sflag [#allocation3], %s180
        %s182 = sand.u32 %s26, 1
        %s183 = smul.addr %s182, 8
        %s184 = scalar_lea.vmem [#allocation2], %s183
        %p185 = pneg %p39
        %p186 = pneg %p36
        %p187 = pneg %p60
        %p188 = pneg %p57
        %p189 = pneg %p81
        %p190 = pneg %p78
        %p191 = pneg %p107
        %p192 = pneg %p104
        %p193 = scmp.lt.s32.totalorder %s18, 1
        %s194 = scalar_select %p193, %s18, 1
        %s195 = smul.addr %s194, 8
        %s196 = scalar_lea.vmem %s3, %s195
        %p197 = scmp.lt.s32.totalorder %s18, 1
        %s198 = scalar_select %p197, %s18, 1
        %s199 = smul.addr %s198, 8
        %s200 = scalar_lea.vmem %s3, %s199
        %v201 = vld [vmem:[%s171] sm:$0xff]
        %vm202 = vcmp.gt.f32.partialorder %v201, 0.0
        %v203 = vmul.f32 %v201, 0.01
        %v204 = vsel %vm202, %v201, %v203
        %v205 = vld [vmem:[#allocation4] sm:$0xff]
        %v206 = vld [vmem:[#allocation4 + $0x8] sm:$0xff]
        %v207 = vld [vmem:[#allocation4 + $0x10] sm:$0xff]
        %v208 = vld [vmem:[#allocation4 + $0x18] sm:$0xff]
        %v209 = vld [vmem:[%s2] sm:$0x1]
        %v211 = vlaneseq
        %v212 = vshrl.u32 %v211, 7
        %v213 = vsub.s32 0, %v212
        %v214 = vrot.slane %v209, %v213
        %vm216 = vcmask 261120
        %v218 = vsel %vm216, %v204, 0
        %220 = vmatprep.subr.mxu0 0.0
        %221 = vmatpush1.msra.mxu0 0.0
        %222 = vmatprep.subr.mxu0 0.0
        %223 = vmatpush1.msra.mxu0 0.0
        %224 = vmatprep.subr.mxu0 0.0
        %225 = vmatpush1.msra.mxu0 0.0
        %226 = vmatprep.subr.mxu0 0.0
        %227 = vmatpush1.msra.mxu0 0.0
        %228 = vmatprep.subr.mxu0 0.0
        %229 = vmatpush1.msra.mxu0 0.0
        %230 = vmatprep.subr.mxu0 0.0
        %231 = vmatpush1.msra.mxu0 0.0
        %232 = vmatprep.subr.mxu0 0.0
        %233 = vmatpush1.msra.mxu0 0.0
        %234 = vmatprep.subr.mxu0 0.0
        %235 = vmatpush1.msra.mxu0 0.0
        %236 = vmatprep.subr.mxu0 0.0
        %237 = vmatpush1.msra.mxu0 0.0
        %238 = vmatprep.subr.mxu0 0.0
        %239 = vmatpush1.msra.mxu0 0.0
        %240 = vmatprep.subr.mxu0 0.0
        %241 = vmatpush1.msra.mxu0 0.0
        %242 = vmatprep.subr.mxu0 0.0
        %243 = vmatpush1.msra.mxu0 0.0
        %244 = vmatprep.subr.mxu0 0.0
        %245 = vmatpush1.msra.mxu0 %v208
        %246 = vmatprep.subr.mxu0 0.0
        %247 = vmatpush1.msra.mxu0 %v207
        %248 = vmatprep.subr.mxu0 0.0
        %249 = vmatpush1.msra.mxu0 %v206
        %250 = vmatprep.subr.mxu0 0.0
        %251 = vmatpush1.msra.mxu0 %v205
        %252 = vmatprep.subr.mxu0 0.0
        %253 = vmatpush2.msra.mxu0 0.0
        %254 = vmatprep.subr.mxu0 0.0
        %255 = vmatpush2.msra.mxu0 0.0
        %256 = vmatprep.subr.mxu0 0.0
        %257 = vmatpush2.msra.mxu0 0.0
        %258 = vmatprep.subr.mxu0 0.0
        %259 = vmatpush2.msra.mxu0 0.0
        %260 = vmatprep.subr.mxu0 0.0
        %261 = vmatpush2.msra.mxu0 0.0
        %262 = vmatprep.subr.mxu0 0.0
        %263 = vmatpush2.msra.mxu0 0.0
        %264 = vmatprep.subr.mxu0 0.0
        %265 = vmatpush2.msra.mxu0 0.0
        %266 = vmatprep.subr.mxu0 0.0
        %267 = vmatpush2.msra.mxu0 0.0
        %268 = vmatprep.subr.mxu0 0.0
        %269 = vmatpush2.msra.mxu0 0.0
        %270 = vmatprep.subr.mxu0 0.0
        %271 = vmatpush2.msra.mxu0 0.0
        %272 = vmatprep.subr.mxu0 0.0
        %273 = vmatpush2.msra.mxu0 0.0
        %274 = vmatprep.subr.mxu0 0.0
        %275 = vmatpush2.msra.mxu0 0.0
        %276 = vmatprep.subr.mxu0 0.0
        %277 = vmatpush2.msra.mxu0 0.0
        %278 = vmatprep.subr.mxu0 0.0
        %279 = vmatpush2.msra.mxu0 0.0
        %280 = vmatprep.subr.mxu0 0.0
        %281 = vmatpush2.msra.mxu0 0.0
        %282 = vmatprep.subr.mxu0 0.0
        %283 = vmatpush2.msra.mxu0 0.0
        %284 = vmatprep.mubr.f32.mxu0 0.0
        %285 = vmatmul.mubr.f32.gmra.mxu0 %v218
        %v286 = vpop.f32.mrf.mxu0
        %v287 = vadd.f32 %v214, %v286
        %v288 = vpop.f32.mrf.mxu0
        %289 = vdwg.mxu0
        %290 = vmax.xlane.f32.xlu0 %v287
        %v291 = vpop.xlane.xlu0 %290
        %v292 = vsub.f32 %v287, %v291
        %v293 = vmul.f32 %v292, 1.442695
        %v294 = vpow.pop %v293
        %295 = vadd.xlane.f32.xlu0 %v294
        %v296 = vpop.xlane.xlu0 %295
        %v297 = vlog2.pop %v296
        %v298 = vmul.f32 %v297, 0.6931472
        %v299 = vsub.f32 %v292, %v298
        %vm300 = vcmask 39936
        %301 = vst.msk [vmem:[%s200] sm:$0xff] %vm300, %v299
        %p302 = scmp.lt.s32.totalorder %s18, 1
        %s303 = scalar_select %p302, %s18, 1
        %s304 = smul.addr %s303, 8
        %s305 = scalar_lea.vmem %s3, %s304
        // Predicated region
        $region41: #{fine_ner_head_padded.1} parent=31 // pred_check
          %p306 = pneg %p104
        $region42: #{fine_ner_head_padded.1} parent=31 // pred_check_branch
          %308 = sbr.rel (%p306) target = $region44
        $region43: #{fine_ner_head_padded.1} parent=31 // pred_region
          _
        $region44: #{fine_ner_head_padded.1} parent=31 // pred_fallthru
          _
      $region32: #{fine_ner_head_padded.1} parent=5 // pred_fallthru
        _
      %p309 = scmp.le.s32.totalorder 2, %s13
      // Predicated region
      $region45: #{fine_ner_head_padded.1} parent=5 // pred_check
        %p310 = pneg %p309
      $region46: #{fine_ner_head_padded.1} parent=5 // pred_check_branch
        %312 = sbr.rel (%p310) target = $region48
      $region47: #{fine_ner_head_padded.1} parent=5 // pred_region
        %s313 = ssub.s32 %s13, 2
        // Predicated region
        $region49: #{fine_ner_head_padded.1} parent=47 // pred_check
          %p314 = pneg %p110
        $region50: #{fine_ner_head_padded.1} parent=47 // pred_check_branch
          %316 = sbr.rel (%p314) target = $region52
        $region51: #{fine_ner_head_padded.1} parent=47 // pred_region
          %p317 = scmp.lt.s32.totalorder %s19, 1
          %s318 = scalar_select %p317, %s19, 1
          %s319 = smul.addr %s318, 8
          %s320 = scalar_lea.vmem %s3, %s319
        $region52: #{fine_ner_head_padded.1} parent=47 // pred_fallthru
          _
      $region48: #{fine_ner_head_padded.1} parent=5 // pred_fallthru
        _
    $region6: #{fine_ner_head_padded.1} parent=1 // loop_footer
      %s17 = sadd.s32 1, %s13
    $region7: #{fine_ner_head_padded.1} parent=1 // loop_footer_branch
      %12 = sbr.rel target = $region3
    $region8: #{fine_ner_head_padded.1} parent=1 // loop_exit
      _
    %321 = vsyncpa [#allocation3], 1
    %s322 = scalar_lea.sflag [#allocation3], 1
    %323 = vsyncpa %s322, 1
    %324 = vsyncpa [#allocation5], 1

</llo_original>
